<compile_context>
chip_gen: v7x
topology: tpu7x:2x2x1
jax: 0.10.0
libtpu: 0.0.40
codegen_flags: <defaults>
</compile_context>

<pallas_src>
import jax
import jax.numpy as jnp
from jax.experimental import pallas as pl
from jax.experimental.pallas import tpu as pltpu


# ---------------------------------------------------------------------------
# Kernel bodies
# ---------------------------------------------------------------------------
def _mlp_mean(x, y, w1x, w1y, b1, w2, b2, w3, b3):
    """3-layer MLP on (n_spt, ...) inputs, returning the row-mean (1, n_out)."""
    # Layer 1: split-input linear (replaces the concat) + ReLU.
    h = (jnp.dot(x, w1x, preferred_element_type=jnp.float32)
         + jnp.dot(y, w1y, preferred_element_type=jnp.float32)
         + b1)
    h = jnp.maximum(h, 0.0)
    # Layer 2 + ReLU.
    h = jnp.dot(h, w2, preferred_element_type=jnp.float32) + b2
    h = jnp.maximum(h, 0.0)
    # Mean is linear and layer 3 has no activation -> fold the mean before the
    # final matmul: exact, and shrinks the last MXU pass to a single row.
    m = jnp.mean(h, axis=0, keepdims=True)                     # (1, n_hid1)
    return jnp.dot(m, w3, preferred_element_type=jnp.float32) + b3  # (1, n_out)


def aug_info_kernel(x_ref, y_ref, w1x_ref, w1y_ref, b1_ref, w2_ref, b2_ref,
                    w3_ref, b3_ref, o_ref):
    o_ref[...] = _mlp_mean(x_ref[...], y_ref[...],
                           w1x_ref[...], w1y_ref[...], b1_ref[...],
                           w2_ref[...], b2_ref[...],
                           w3_ref[...], b3_ref[...])


def aug_info_batched_kernel(x_ref, y_ref, w1x_ref, w1y_ref, b1_ref, w2_ref,
                            b2_ref, w3_ref, b3_ref, o_ref):
    # Per-grid-step blocks: x_ref (1, n_spt, x_dim), o_ref (1, 1, n_out).
    o_ref[0] = _mlp_mean(x_ref[0], y_ref[0],
                         w1x_ref[...], w1y_ref[...], b1_ref[...],
                         w2_ref[...], b2_ref[...],
                         w3_ref[...], b3_ref[...])


# ---------------------------------------------------------------------------
# Wrappers
# ---------------------------------------------------------------------------
@jax.jit
def aug_info_forward(x, y, kparams):
    """Single task. x: (n_spt, x_dim), y: (n_spt, y_dim) -> (1, n_out)."""
    w1x, w1y, b1, w2, b2, w3, b3 = kparams
    n_out = w3.shape[1]
    vmem = pl.BlockSpec(memory_space=pltpu.MemorySpace.VMEM)
    return pl.pallas_call(
        aug_info_kernel,
        out_shape=jax.ShapeDtypeStruct((1, n_out), jnp.float32),
        in_specs=[vmem] * 9,
        out_specs=vmem,
    )(x, y, w1x, w1y, b1, w2, b2, w3, b3)


@jax.jit
def aug_info_forward_batched(x, y, kparams):
    """Batched tasks. x: (B, n_spt, x_dim), y: (B, n_spt, y_dim)
    -> (B, 1, n_out).  One pallas_call, grid=(B,) amortizes dispatch; the
    task axis is "parallel" so v7x shards it across its two TensorCores."""
    w1x, w1y, b1, w2, b2, w3, b3 = kparams
    n_tasks, n_spt, x_dim = x.shape
    y_dim = y.shape[-1]
    h0, h1, n_out = w1x.shape[1], w2.shape[1], w3.shape[1]

    def const_spec(shape):
        # Weights/biases: same (whole-array) block for every task.
        return pl.BlockSpec(shape, lambda b: (0,) * len(shape))

    grid_spec = pltpu.PrefetchScalarGridSpec(
        num_scalar_prefetch=0,
        grid=(n_tasks,),
        in_specs=[
            pl.BlockSpec((1, n_spt, x_dim), lambda b: (b, 0, 0)),
            pl.BlockSpec((1, n_spt, y_dim), lambda b: (b, 0, 0)),
            const_spec((x_dim, h0)),
            const_spec((y_dim, h0)),
            const_spec((1, h0)),
            const_spec((h0, h1)),
            const_spec((1, h1)),
            const_spec((h1, n_out)),
            const_spec((1, n_out)),
        ],
        out_specs=pl.BlockSpec((1, 1, n_out), lambda b: (b, 0, 0)),
    )
    return pl.pallas_call(
        aug_info_batched_kernel,
        out_shape=jax.ShapeDtypeStruct((n_tasks, 1, n_out), jnp.float32),
        grid_spec=grid_spec,
        compiler_params=pltpu.CompilerParams(
            dimension_semantics=("parallel",)),
    )(x, y, w1x, w1y, b1, w2, b2, w3, b3)


# ---------------------------------------------------------------------------
# Parameters
# ---------------------------------------------------------------------------
def init_aug_info_params(key, n_in, n_hid, n_out):
    """PyTorch-layout params: Kaiming normal (fan_in, gain=sqrt(2)) weights of
    shape (out, in), zero biases — matches init.kaiming_normal_(mode='fan_in')
    + constant_(bias, 0)."""
    k1, k2, k3 = jax.random.split(key, 3)

    def kaiming(k, fan_out, fan_in):
        std = jnp.sqrt(2.0 / fan_in)
        return (std * jax.random.normal(k, (fan_out, fan_in))).astype(jnp.float32)

    w1 = kaiming(k1, n_hid[0], n_in)
    b1 = jnp.zeros((n_hid[0],), jnp.float32)
    w2 = kaiming(k2, n_hid[1], n_hid[0])
    b2 = jnp.zeros((n_hid[1],), jnp.float32)
    w3 = kaiming(k3, n_out, n_hid[1])
    b3 = jnp.zeros((n_out,), jnp.float32)
    return (w1, b1, w2, b2, w3, b3)


def prepare_kernel_params(params, x_dim):
    """ONE-TIME layout prep (do this at init, not per forward call):
    weights -> (in, out), biases -> (1, out), and W1 split along its input
    axis into the x-feature and y-feature halves so the kernel never needs a
    concat of [x, y]."""
    w1, b1, w2, b2, w3, b3 = params
    w1t = jnp.asarray(w1, jnp.float32).T                 # (n_in, h0)
    return (w1t[:x_dim],                                 # (x_dim, h0)
            w1t[x_dim:],                                 # (y_dim, h0)
            jnp.asarray(b1, jnp.float32)[None, :],       # (1, h0)
            jnp.asarray(w2, jnp.float32).T,              # (h0, h1)
            jnp.asarray(b2, jnp.float32)[None, :],       # (1, h1)
            jnp.asarray(w3, jnp.float32).T,              # (h1, n_out)
            jnp.asarray(b3, jnp.float32)[None, :])       # (1, n_out)


# ---------------------------------------------------------------------------
# Reference
# ---------------------------------------------------------------------------
def aug_info_reference(x, y, params):
    w1, b1, w2, b2, w3, b3 = params
    xy = jnp.concatenate([x, y], axis=-1)
    h = jax.nn.relu(xy @ w1.T + b1)
    h = jax.nn.relu(h @ w2.T + b2)
    o = h @ w3.T + b3
    return o.mean(axis=0, keepdims=True)


if __name__ == "__main__":
    key = jax.random.PRNGKey(0)
    k_x, k_y, k_p = jax.random.split(key, 3)

    # Image-completion style task: x = 2-D pixel coords, y = 3-channel value.
    # n_spt kept a multiple of 8 (f32 sublane) per the layout guidance.
    n_spt, x_dim, y_dim = 8, 2, 3
    n_in = x_dim + y_dim
    n_hid = [32, 32]
    n_out = 16
    n_tasks = 4

    params = init_aug_info_params(k_p, n_in, n_hid, n_out)
    kparams = prepare_kernel_params(params, x_dim)   # one-time layout prep

    # ---- single task (exact PyTorch module semantics) ----
    x = jax.random.normal(k_x, (n_spt, x_dim), dtype=jnp.float32)
    y = jax.random.normal(k_y, (n_spt, y_dim), dtype=jnp.float32)
    out = jax.block_until_ready(aug_info_forward(x, y, kparams))
    ref = aug_info_reference(x, y, params)
    assert out.shape == (1, n_out), out.shape
    assert jnp.allclose(out, ref, atol=1e-5, rtol=1e-4), (out, ref)

    # ---- batched tasks: one pallas_call, grid=(n_tasks,), "parallel" axis ----
    xb = jax.random.normal(k_x, (n_tasks, n_spt, x_dim), dtype=jnp.float32)
    yb = jax.random.normal(k_y, (n_tasks, n_spt, y_dim), dtype=jnp.float32)
    outb = jax.block_until_ready(aug_info_forward_batched(xb, yb, kparams))
    refb = jax.vmap(lambda xi, yi: aug_info_reference(xi, yi, params))(xb, yb)
    assert outb.shape == (n_tasks, 1, n_out), outb.shape
    assert jnp.allclose(outb, refb, atol=1e-5, rtol=1e-4), (outb, refb)

    print("KERNEL_OK")
</pallas_src>

<mosaic_0001>
module attributes {stable_mosaic.version = 11 : i64} {
  func.func @aug_info_kernel(%arg0: memref<8x2xf32, #tpu.memory_space<vmem>>, %arg1: memref<8x3xf32, #tpu.memory_space<vmem>>, %arg2: memref<2x32xf32, #tpu.memory_space<vmem>>, %arg3: memref<3x32xf32, #tpu.memory_space<vmem>>, %arg4: memref<1x32xf32, #tpu.memory_space<vmem>>, %arg5: memref<32x32xf32, #tpu.memory_space<vmem>>, %arg6: memref<1x32xf32, #tpu.memory_space<vmem>>, %arg7: memref<32x16xf32, #tpu.memory_space<vmem>>, %arg8: memref<1x16xf32, #tpu.memory_space<vmem>>, %arg9: memref<1x16xf32, #tpu.memory_space<vmem>>) attributes {dimension_semantics = [], scalar_prefetch = 0 : i64, scratch_operands = 0 : i64, tpu.core_type = #tpu.core_type<tc>} {
    %c0 = arith.constant 0 : index
    %c0_0 = arith.constant 0 : index
    %0 = vector.load %arg0[%c0, %c0_0] : memref<8x2xf32, #tpu.memory_space<vmem>>, vector<8x2xf32>
    %c0_1 = arith.constant 0 : index
    %c0_2 = arith.constant 0 : index
    %1 = vector.load %arg1[%c0_1, %c0_2] : memref<8x3xf32, #tpu.memory_space<vmem>>, vector<8x3xf32>
    %c0_3 = arith.constant 0 : index
    %c0_4 = arith.constant 0 : index
    %2 = vector.load %arg2[%c0_3, %c0_4] : memref<2x32xf32, #tpu.memory_space<vmem>>, vector<2x32xf32>
    %c0_5 = arith.constant 0 : index
    %c0_6 = arith.constant 0 : index
    %3 = vector.load %arg3[%c0_5, %c0_6] : memref<3x32xf32, #tpu.memory_space<vmem>>, vector<3x32xf32>
    %c0_7 = arith.constant 0 : index
    %c0_8 = arith.constant 0 : index
    %4 = vector.load %arg4[%c0_7, %c0_8] : memref<1x32xf32, #tpu.memory_space<vmem>>, vector<1x32xf32>
    %c0_9 = arith.constant 0 : index
    %c0_10 = arith.constant 0 : index
    %5 = vector.load %arg5[%c0_9, %c0_10] : memref<32x32xf32, #tpu.memory_space<vmem>>, vector<32x32xf32>
    %c0_11 = arith.constant 0 : index
    %c0_12 = arith.constant 0 : index
    %6 = vector.load %arg6[%c0_11, %c0_12] : memref<1x32xf32, #tpu.memory_space<vmem>>, vector<1x32xf32>
    %c0_13 = arith.constant 0 : index
    %c0_14 = arith.constant 0 : index
    %7 = vector.load %arg7[%c0_13, %c0_14] : memref<32x16xf32, #tpu.memory_space<vmem>>, vector<32x16xf32>
    %c0_15 = arith.constant 0 : index
    %c0_16 = arith.constant 0 : index
    %8 = vector.load %arg8[%c0_15, %c0_16] : memref<1x16xf32, #tpu.memory_space<vmem>>, vector<1x16xf32>
    %cst = arith.constant dense<0.000000e+00> : vector<8x32xf32>
    %9 = tpu.matmul %0, %2, %cst {dimension_numbers = #tpu.dot_dimension_numbers<[1], [0], [0], [1], [0, 0, 1, 1], [], []>} : vector<8x2xf32>, vector<2x32xf32>, vector<8x32xf32> -> vector<8x32xf32>
    %cst_17 = arith.constant dense<0.000000e+00> : vector<8x32xf32>
    %10 = tpu.matmul %1, %3, %cst_17 {dimension_numbers = #tpu.dot_dimension_numbers<[1], [0], [0], [1], [0, 0, 1, 1], [], []>} : vector<8x3xf32>, vector<3x32xf32>, vector<8x32xf32> -> vector<8x32xf32>
    %11 = arith.addf %9, %10 : vector<8x32xf32>
    %12 = vector.broadcast %4 : vector<1x32xf32> to vector<8x32xf32>
    %13 = arith.addf %11, %12 : vector<8x32xf32>
    %cst_18 = arith.constant 0.000000e+00 : f32
    %14 = vector.broadcast %cst_18 : f32 to vector<8x32xf32>
    %15 = arith.maximumf %13, %14 : vector<8x32xf32>
    %cst_19 = arith.constant dense<0.000000e+00> : vector<8x32xf32>
    %16 = tpu.matmul %15, %5, %cst_19 {dimension_numbers = #tpu.dot_dimension_numbers<[1], [0], [0], [1], [0, 0, 1, 1], [], []>} : vector<8x32xf32>, vector<32x32xf32>, vector<8x32xf32> -> vector<8x32xf32>
    %17 = vector.broadcast %6 : vector<1x32xf32> to vector<8x32xf32>
    %18 = arith.addf %16, %17 : vector<8x32xf32>
    %cst_20 = arith.constant 0.000000e+00 : f32
    %19 = vector.broadcast %cst_20 : f32 to vector<8x32xf32>
    %20 = arith.maximumf %18, %19 : vector<8x32xf32>
    %cst_21 = arith.constant dense<0.000000e+00> : vector<32xf32>
    %21 = vector.multi_reduction <add>, %20, %cst_21 [0] : vector<8x32xf32> to vector<32xf32>
    %22 = vector.shape_cast %21 : vector<32xf32> to vector<1x32xf32>
    %cst_22 = arith.constant 8.000000e+00 : f32
    %23 = vector.broadcast %cst_22 : f32 to vector<1x32xf32>
    %24 = arith.divf %22, %23 : vector<1x32xf32>
    %cst_23 = arith.constant dense<0.000000e+00> : vector<1x16xf32>
    %25 = tpu.matmul %24, %7, %cst_23 {dimension_numbers = #tpu.dot_dimension_numbers<[1], [0], [0], [1], [0, 0, 1, 1], [], []>} : vector<1x32xf32>, vector<32x16xf32>, vector<1x16xf32> -> vector<1x16xf32>
    %26 = arith.addf %25, %8 : vector<1x16xf32>
    %c0_24 = arith.constant 0 : index
    %c0_25 = arith.constant 0 : index
    %27 = vector.load %arg9[%c0_24, %c0_25] : memref<1x16xf32, #tpu.memory_space<vmem>>, vector<1x16xf32>
    tpu.vector_store %arg9[%c0_24, %c0_25], %26 {strides = array<i32>} : memref<1x16xf32, #tpu.memory_space<vmem>>, vector<1x16xf32>,
    return
  }
}

</mosaic_0001>

<llo_original>
// kernel: aug_info_forward.1
$region0: #{aug_info_forward.1}
  #allocation0 [shape = 'u32[]', space=smem, size = 0x4, offset = 0x4, fixed_abs, tag = 'smem constant byte address 0x4 - core index']
  #allocation1 [shape = 'u32[144,128]{1,0:T(1,128)}', space=vmem, size = 0x12000, scoped, tag = 'internal scratch']
  %s0 = inlined_call_operand.vmem [shape: f32[8,2], index: 0, kind: input, shape index: {}]
  %s1 = inlined_call_operand.vmem [shape: f32[8,3], index: 1, kind: input, shape index: {}]
  %s2 = inlined_call_operand.vmem [shape: f32[2,32], index: 2, kind: input, shape index: {}]
  %s3 = inlined_call_operand.vmem [shape: f32[3,32], index: 3, kind: input, shape index: {}]
  %s4 = inlined_call_operand.vmem [shape: f32[1,32], index: 4, kind: input, shape index: {}]
  %s5 = inlined_call_operand.vmem [shape: f32[32,32], index: 5, kind: input, shape index: {}]
  %s6 = inlined_call_operand.vmem [shape: f32[1,32], index: 6, kind: input, shape index: {}]
  %s7 = inlined_call_operand.vmem [shape: f32[32,16], index: 7, kind: input, shape index: {}]
  %s8 = inlined_call_operand.vmem [shape: f32[1,16], index: 8, kind: input, shape index: {}]
  %s9 = inlined_call_operand.hbm [shape: f32[1,16], index: 9, kind: output, shape index: {}]
  %s10 = sld [smem:[#allocation0]]
  $region46: #{aug_info_forward.1} parent=0
    _
  %s12 = ssub.s32 1, %s10
  %s13 = scalar_select 0, %s12, %s10
  $region1: #{aug_info_forward.1} parent=0
    #allocation2 [shape = 'u8[512]{0}', space=vmem, size = 0x400, scoped, tag = 'output window, operand 0, single buffered']
    #allocation3 [shape = 's32[1]{0}', space=sflag, size = 0x4, scoped, tag = 'scoped memory for aug_info_forward.1']
    %14 = vsyncpa [#allocation3], 0
    // Predicated region
    $region2: #{aug_info_forward.1} parent=1 // pred_check
      _
    $region3: #{aug_info_forward.1} parent=1 // pred_check_branch
      %16 = sbr.rel (0) target = $region5
    $region4: #{aug_info_forward.1} parent=1 // pred_region
      _
    $region5: #{aug_info_forward.1} parent=1 // pred_fallthru
      _
    // Predicated region
    $region6: #{aug_info_forward.1} parent=1 // pred_check
      _
    $region7: #{aug_info_forward.1} parent=1 // pred_check_branch
      %18 = sbr.rel (0) target = $region9
    $region8: #{aug_info_forward.1} parent=1 // pred_region
      _
    $region9: #{aug_info_forward.1} parent=1 // pred_fallthru
      _
    // Predicated region
    $region10: #{aug_info_forward.1} parent=1 // pred_check
      _
    $region11: #{aug_info_forward.1} parent=1 // pred_check_branch
      %20 = sbr.rel (0) target = $region13
    $region12: #{aug_info_forward.1} parent=1 // pred_region
      _
    $region13: #{aug_info_forward.1} parent=1 // pred_fallthru
      _
    // Predicated region
    $region14: #{aug_info_forward.1} parent=1 // pred_check
      _
    $region15: #{aug_info_forward.1} parent=1 // pred_check_branch
      %22 = sbr.rel (0) target = $region17
    $region16: #{aug_info_forward.1} parent=1 // pred_region
      _
    $region17: #{aug_info_forward.1} parent=1 // pred_fallthru
      _
    // Predicated region
    $region18: #{aug_info_forward.1} parent=1 // pred_check
      _
    $region19: #{aug_info_forward.1} parent=1 // pred_check_branch
      %24 = sbr.rel (0) target = $region21
    $region20: #{aug_info_forward.1} parent=1 // pred_region
      _
    $region21: #{aug_info_forward.1} parent=1 // pred_fallthru
      _
    // Predicated region
    $region22: #{aug_info_forward.1} parent=1 // pred_check
      _
    $region23: #{aug_info_forward.1} parent=1 // pred_check_branch
      %26 = sbr.rel (0) target = $region25
    $region24: #{aug_info_forward.1} parent=1 // pred_region
      _
    $region25: #{aug_info_forward.1} parent=1 // pred_fallthru
      _
    // Predicated region
    $region26: #{aug_info_forward.1} parent=1 // pred_check
      _
    $region27: #{aug_info_forward.1} parent=1 // pred_check_branch
      %28 = sbr.rel (0) target = $region29
    $region28: #{aug_info_forward.1} parent=1 // pred_region
      _
    $region29: #{aug_info_forward.1} parent=1 // pred_fallthru
      _
    // Predicated region
    $region30: #{aug_info_forward.1} parent=1 // pred_check
      _
    $region31: #{aug_info_forward.1} parent=1 // pred_check_branch
      %30 = sbr.rel (0) target = $region33
    $region32: #{aug_info_forward.1} parent=1 // pred_region
      _
    $region33: #{aug_info_forward.1} parent=1 // pred_fallthru
      _
    // Predicated region
    $region34: #{aug_info_forward.1} parent=1 // pred_check
      _
    $region35: #{aug_info_forward.1} parent=1 // pred_check_branch
      %32 = sbr.rel (0) target = $region37
    $region36: #{aug_info_forward.1} parent=1 // pred_region
      _
    $region37: #{aug_info_forward.1} parent=1 // pred_fallthru
      _
    %v33 = vld [vmem:[%s0] sm:$0xff]
    %v34 = vld [vmem:[%s1] sm:$0xff]
    %v35 = vld [vmem:[%s2] sm:$0x3]
    %v36 = vld [vmem:[%s3] sm:$0x7]
    %v37 = vld [vmem:[%s4] sm:$0x1]
    %v38 = vld [vmem:[%s5] sm:$0xff]
    %v39 = vld [vmem:[%s5 + $0x8] sm:$0xff]
    %v40 = vld [vmem:[%s5 + $0x10] sm:$0xff]
    %v41 = vld [vmem:[%s5 + $0x18] sm:$0xff]
    %v42 = vld [vmem:[%s6] sm:$0x1]
    %v43 = vld [vmem:[%s7] sm:$0xff]
    %v44 = vld [vmem:[%s7 + $0x8] sm:$0xff]
    %v45 = vld [vmem:[%s7 + $0x10] sm:$0xff]
    %v46 = vld [vmem:[%s7 + $0x18] sm:$0xff]
    %v47 = vld [vmem:[%s8] sm:$0x1]
    %vm48 = vcmask 23552
    %v50 = vsel %vm48, %v34, 0
    %vm52 = vcmask 1042432
    %v54 = vsel %vm52, %v36, 0
    %56 = vmatprep.subr.mxu0 0.0
    %57 = vmatpush1.msra.mxu0 %v54
    %58 = vmatprep.subr.mxu0 0.0
    %59 = vmatpush1.msra.mxu0 0.0
    %60 = vmatprep.subr.mxu0 0.0
    %61 = vmatpush1.msra.mxu0 0.0
    %62 = vmatprep.subr.mxu0 0.0
    %63 = vmatpush1.msra.mxu0 0.0
    %64 = vmatprep.subr.mxu0 0.0
    %65 = vmatpush1.msra.mxu0 0.0
    %66 = vmatprep.subr.mxu0 0.0
    %67 = vmatpush1.msra.mxu0 0.0
    %68 = vmatprep.subr.mxu0 0.0
    %69 = vmatpush1.msra.mxu0 0.0
    %70 = vmatprep.subr.mxu0 0.0
    %71 = vmatpush1.msra.mxu0 0.0
    %72 = vmatprep.subr.mxu0 0.0
    %73 = vmatpush1.msra.mxu0 0.0
    %74 = vmatprep.subr.mxu0 0.0
    %75 = vmatpush1.msra.mxu0 0.0
    %76 = vmatprep.subr.mxu0 0.0
    %77 = vmatpush1.msra.mxu0 0.0
    %78 = vmatprep.subr.mxu0 0.0
    %79 = vmatpush1.msra.mxu0 0.0
    %80 = vmatprep.subr.mxu0 0.0
    %81 = vmatpush1.msra.mxu0 0.0
    %82 = vmatprep.subr.mxu0 0.0
    %83 = vmatpush1.msra.mxu0 0.0
    %84 = vmatprep.subr.mxu0 0.0
    %85 = vmatpush1.msra.mxu0 0.0
    %86 = vmatprep.subr.mxu0 0.0
    %87 = vmatpush1.msra.mxu0 0.0
    %88 = vmatprep.subr.mxu0 0.0
    %89 = vmatpush1.msra.mxu0 0.0
    %90 = vmatprep.subr.mxu0 0.0
    %91 = vmatpush1.msra.mxu0 0.0
    %92 = vmatprep.subr.mxu0 0.0
    %93 = vmatpush1.msra.mxu0 0.0
    %94 = vmatprep.subr.mxu0 0.0
    %95 = vmatpush1.msra.mxu0 0.0
    %96 = vmatprep.subr.mxu0 0.0
    %97 = vmatpush1.msra.mxu0 0.0
    %98 = vmatprep.subr.mxu0 0.0
    %99 = vmatpush1.msra.mxu0 0.0
    %100 = vmatprep.subr.mxu0 0.0
    %101 = vmatpush1.msra.mxu0 0.0
    %102 = vmatprep.subr.mxu0 0.0
    %103 = vmatpush1.msra.mxu0 0.0
    %104 = vmatprep.subr.mxu0 0.0
    %105 = vmatpush1.msra.mxu0 0.0
    %106 = vmatprep.subr.mxu0 0.0
    %107 = vmatpush1.msra.mxu0 0.0
    %108 = vmatprep.subr.mxu0 0.0
    %109 = vmatpush1.msra.mxu0 0.0
    %110 = vmatprep.subr.mxu0 0.0
    %111 = vmatpush1.msra.mxu0 0.0
    %112 = vmatprep.subr.mxu0 0.0
    %113 = vmatpush1.msra.mxu0 0.0
    %114 = vmatprep.subr.mxu0 0.0
    %115 = vmatpush1.msra.mxu0 0.0
    %116 = vmatprep.subr.mxu0 0.0
    %117 = vmatpush1.msra.mxu0 0.0
    %118 = vmatprep.subr.mxu0 0.0
    %119 = vmatpush1.msra.mxu0 0.0
    %120 = vmatprep.mubr.f32.mxu0 0.0
    %121 = vmatmul.mubr.f32.gmra.mrb[0].mxu0 %v50
    %v122 = vpop.f32.mrb[0].mxu0
    %v123 = vadd.f32 0.0, %v122
    %v124 = vpop.f32.mrb[0].mxu0
    %125 = vdwg.mxu0
    %vm126 = vcmask 15360
    %v128 = vsel %vm126, %v33, 0
    %vm130 = vcmask 1041408
    %v132 = vsel %vm130, %v35, 0
    %134 = vmatprep.subr.mxu0 0.0
    %135 = vmatpush1.msra.mxu0 %v132
    %136 = vmatprep.subr.mxu0 0.0
    %137 = vmatpush1.msra.mxu0 0.0
    %138 = vmatprep.subr.mxu0 0.0
    %139 = vmatpush1.msra.mxu0 0.0
    %140 = vmatprep.subr.mxu0 0.0
    %141 = vmatpush1.msra.mxu0 0.0
    %142 = vmatprep.subr.mxu0 0.0
    %143 = vmatpush1.msra.mxu0 0.0
    %144 = vmatprep.subr.mxu0 0.0
    %145 = vmatpush1.msra.mxu0 0.0
    %146 = vmatprep.subr.mxu0 0.0
    %147 = vmatpush1.msra.mxu0 0.0
    %148 = vmatprep.subr.mxu0 0.0
    %149 = vmatpush1.msra.mxu0 0.0
    %150 = vmatprep.subr.mxu0 0.0
    %151 = vmatpush1.msra.mxu0 0.0
    %152 = vmatprep.subr.mxu0 0.0
    %153 = vmatpush1.msra.mxu0 0.0
    %154 = vmatprep.subr.mxu0 0.0
    %155 = vmatpush1.msra.mxu0 0.0
    %156 = vmatprep.subr.mxu0 0.0
    %157 = vmatpush1.msra.mxu0 0.0
    %158 = vmatprep.subr.mxu0 0.0
    %159 = vmatpush1.msra.mxu0 0.0
    %160 = vmatprep.subr.mxu0 0.0
    %161 = vmatpush1.msra.mxu0 0.0
    %162 = vmatprep.subr.mxu0 0.0
    %163 = vmatpush1.msra.mxu0 0.0
    %164 = vmatprep.subr.mxu0 0.0
    %165 = vmatpush1.msra.mxu0 0.0
    %166 = vmatprep.subr.mxu0 0.0
    %167 = vmatpush1.msra.mxu0 0.0
    %168 = vmatprep.subr.mxu0 0.0
    %169 = vmatpush1.msra.mxu0 0.0
    %170 = vmatprep.subr.mxu0 0.0
    %171 = vmatpush1.msra.mxu0 0.0
    %172 = vmatprep.subr.mxu0 0.0
    %173 = vmatpush1.msra.mxu0 0.0
    %174 = vmatprep.subr.mxu0 0.0
    %175 = vmatpush1.msra.mxu0 0.0
    %176 = vmatprep.subr.mxu0 0.0
    %177 = vmatpush1.msra.mxu0 0.0
    %178 = vmatprep.subr.mxu0 0.0
    %179 = vmatpush1.msra.mxu0 0.0
    %180 = vmatprep.subr.mxu0 0.0
    %181 = vmatpush1.msra.mxu0 0.0
    %182 = vmatprep.subr.mxu0 0.0
    %183 = vmatpush1.msra.mxu0 0.0
    %184 = vmatprep.subr.mxu0 0.0
    %185 = vmatpush1.msra.mxu0 0.0
    %186 = vmatprep.subr.mxu0 0.0
    %187 = vmatpush1.msra.mxu0 0.0
    %188 = vmatprep.subr.mxu0 0.0
    %189 = vmatpush1.msra.mxu0 0.0
    %190 = vmatprep.subr.mxu0 0.0
    %191 = vmatpush1.msra.mxu0 0.0
    %192 = vmatprep.subr.mxu0 0.0
    %193 = vmatpush1.msra.mxu0 0.0
    %194 = vmatprep.subr.mxu0 0.0
    %195 = vmatpush1.msra.mxu0 0.0
    %196 = vmatprep.subr.mxu0 0.0
    %197 = vmatpush1.msra.mxu0 0.0
    %198 = vmatprep.mubr.f32.mxu0 0.0
    %199 = vmatmul.mubr.f32.gmra.mrb[0].mxu0 %v128
    %v200 = vpop.f32.mrb[0].mxu0
    %v201 = vadd.f32 %v123, %v200
    %v202 = vpop.f32.mrb[0].mxu0
    %203 = vdwg.mxu0
    %v205 = vlaneseq
    %v206 = vshrl.u32 %v205, 7
    %v207 = vsub.s32 0, %v206
    %v208 = vrot.slane %v37, %v207
    %v210 = vadd.f32 %v201, %v208
    %v211 = vmax.f32 %v210, 0.0
    %v213 = vlaneseq
    %v214 = vshrl.u32 %v213, 7
    %v215 = vsub.s32 0, %v214
    %v216 = vrot.slane %v42, %v215
    %vm218 = vcmask 261120
    %v220 = vsel %vm218, %v211, 0
    %222 = vmatprep.subr.mxu0 0.0
    %223 = vmatpush1.msra.mxu0 %v38
    %224 = vmatprep.subr.mxu0 0.0
    %225 = vmatpush1.msra.mxu0 %v39
    %226 = vmatprep.subr.mxu0 0.0
    %227 = vmatpush1.msra.mxu0 %v40
    %228 = vmatprep.subr.mxu0 0.0
    %229 = vmatpush1.msra.mxu0 %v41
    %230 = vmatprep.subr.mxu0 0.0
    %231 = vmatpush1.msra.mxu0 0.0
    %232 = vmatprep.subr.mxu0 0.0
    %233 = vmatpush1.msra.mxu0 0.0
    %234 = vmatprep.subr.mxu0 0.0
    %235 = vmatpush1.msra.mxu0 0.0
    %236 = vmatprep.subr.mxu0 0.0
    %237 = vmatpush1.msra.mxu0 0.0
    %238 = vmatprep.subr.mxu0 0.0
    %239 = vmatpush1.msra.mxu0 0.0
    %240 = vmatprep.subr.mxu0 0.0
    %241 = vmatpush1.msra.mxu0 0.0
    %242 = vmatprep.subr.mxu0 0.0
    %243 = vmatpush1.msra.mxu0 0.0
    %244 = vmatprep.subr.mxu0 0.0
    %245 = vmatpush1.msra.mxu0 0.0
    %246 = vmatprep.subr.mxu0 0.0
    %247 = vmatpush1.msra.mxu0 0.0
    %248 = vmatprep.subr.mxu0 0.0
    %249 = vmatpush1.msra.mxu0 0.0
    %250 = vmatprep.subr.mxu0 0.0
    %251 = vmatpush1.msra.mxu0 0.0
    %252 = vmatprep.subr.mxu0 0.0
    %253 = vmatpush1.msra.mxu0 0.0
    %254 = vmatprep.subr.mxu0 0.0
    %255 = vmatpush1.msra.mxu0 0.0
    %256 = vmatprep.subr.mxu0 0.0
    %257 = vmatpush1.msra.mxu0 0.0
    %258 = vmatprep.subr.mxu0 0.0
    %259 = vmatpush1.msra.mxu0 0.0
    %260 = vmatprep.subr.mxu0 0.0
    %261 = vmatpush1.msra.mxu0 0.0
    %262 = vmatprep.subr.mxu0 0.0
    %263 = vmatpush1.msra.mxu0 0.0
    %264 = vmatprep.subr.mxu0 0.0
    %265 = vmatpush1.msra.mxu0 0.0
    %266 = vmatprep.subr.mxu0 0.0
    %267 = vmatpush1.msra.mxu0 0.0
    %268 = vmatprep.subr.mxu0 0.0
    %269 = vmatpush1.msra.mxu0 0.0
    %270 = vmatprep.subr.mxu0 0.0
    %271 = vmatpush1.msra.mxu0 0.0
    %272 = vmatprep.subr.mxu0 0.0
    %273 = vmatpush1.msra.mxu0 0.0
    %274 = vmatprep.subr.mxu0 0.0
    %275 = vmatpush1.msra.mxu0 0.0
    %276 = vmatprep.subr.mxu0 0.0
    %277 = vmatpush1.msra.mxu0 0.0
    %278 = vmatprep.subr.mxu0 0.0
    %279 = vmatpush1.msra.mxu0 0.0
    %280 = vmatprep.subr.mxu0 0.0
    %281 = vmatpush1.msra.mxu0 0.0
    %282 = vmatprep.subr.mxu0 0.0
    %283 = vmatpush1.msra.mxu0 0.0
    %284 = vmatprep.subr.mxu0 0.0
    %285 = vmatpush1.msra.mxu0 0.0
    %286 = vmatprep.mubr.f32.mxu0 0.0
    %287 = vmatmul.mubr.f32.gmra.mrb[0].mxu0 %v220
    %v288 = vpop.f32.mrb[0].mxu0
    %v289 = vadd.f32 %v216, %v288
    %v290 = vpop.f32.mrb[0].mxu0
    %291 = vdwg.mxu0
    %v292 = vmax.f32 %v289, 0.0
    %v293 = vsel %vm218, %v292, 0.0
    %v294 = vrot.slane %v293, 4
    %v295 = vadd.f32 %v293, %v294
    %v296 = vrot.slane %v295, 2
    %v297 = vadd.f32 %v295, %v296
    %v298 = vrot.slane %v297, 1
    %v299 = vadd.f32 %v297, %v298
    %v300 = vrcp.pop 8.0
    %v301 = vmul.f32 %v299, %v300
    %v303 = vsel %vm218, %v301, 0
    %305 = vmatprep.subr.mxu0 0.0
    %306 = vmatpush1.msra.mxu0 %v43
    %307 = vmatprep.subr.mxu0 0.0
    %308 = vmatpush1.msra.mxu0 %v44
    %309 = vmatprep.subr.mxu0 0.0
    %310 = vmatpush1.msra.mxu0 %v45
    %311 = vmatprep.subr.mxu0 0.0
    %312 = vmatpush1.msra.mxu0 %v46
    %313 = vmatprep.subr.mxu0 0.0
    %314 = vmatpush1.msra.mxu0 0.0
    %315 = vmatprep.subr.mxu0 0.0
    %316 = vmatpush1.msra.mxu0 0.0
    %317 = vmatprep.subr.mxu0 0.0
    %318 = vmatpush1.msra.mxu0 0.0
    %319 = vmatprep.subr.mxu0 0.0
    %320 = vmatpush1.msra.mxu0 0.0
    %321 = vmatprep.subr.mxu0 0.0
    %322 = vmatpush1.msra.mxu0 0.0
    %323 = vmatprep.subr.mxu0 0.0
    %324 = vmatpush1.msra.mxu0 0.0
    %325 = vmatprep.subr.mxu0 0.0
    %326 = vmatpush1.msra.mxu0 0.0
    %327 = vmatprep.subr.mxu0 0.0
    %328 = vmatpush1.msra.mxu0 0.0
    %329 = vmatprep.subr.mxu0 0.0
    %330 = vmatpush1.msra.mxu0 0.0
    %331 = vmatprep.subr.mxu0 0.0
    %332 = vmatpush1.msra.mxu0 0.0
    %333 = vmatprep.subr.mxu0 0.0
    %334 = vmatpush1.msra.mxu0 0.0
    %335 = vmatprep.subr.mxu0 0.0
    %336 = vmatpush1.msra.mxu0 0.0
    %337 = vmatprep.subr.mxu0 0.0
    %338 = vmatpush1.msra.mxu0 0.0
    %339 = vmatprep.subr.mxu0 0.0
    %340 = vmatpush1.msra.mxu0 0.0
    %341 = vmatprep.subr.mxu0 0.0
    %342 = vmatpush1.msra.mxu0 0.0
    %343 = vmatprep.subr.mxu0 0.0
    %344 = vmatpush1.msra.mxu0 0.0
    %345 = vmatprep.subr.mxu0 0.0
    %346 = vmatpush1.msra.mxu0 0.0
    %347 = vmatprep.subr.mxu0 0.0
    %348 = vmatpush1.msra.mxu0 0.0
    %349 = vmatprep.subr.mxu0 0.0
    %350 = vmatpush1.msra.mxu0 0.0
    %351 = vmatprep.subr.mxu0 0.0
    %352 = vmatpush1.msra.mxu0 0.0
    %353 = vmatprep.subr.mxu0 0.0
    %354 = vmatpush1.msra.mxu0 0.0
    %355 = vmatprep.subr.mxu0 0.0
    %356 = vmatpush1.msra.mxu0 0.0
    %357 = vmatprep.subr.mxu0 0.0
    %358 = vmatpush1.msra.mxu0 0.0
    %359 = vmatprep.subr.mxu0 0.0
    %360 = vmatpush1.msra.mxu0 0.0
    %361 = vmatprep.subr.mxu0 0.0
    %362 = vmatpush1.msra.mxu0 0.0
    %363 = vmatprep.subr.mxu0 0.0
    %364 = vmatpush1.msra.mxu0 0.0
    %365 = vmatprep.subr.mxu0 0.0
    %366 = vmatpush1.msra.mxu0 0.0
    %367 = vmatprep.subr.mxu0 0.0
    %368 = vmatpush1.msra.mxu0 0.0
    %369 = vmatprep.mubr.f32.mxu0 0.0
    %370 = vmatmul.mubr.f32.gmra.mrb[0].mxu0 %v303
    %v371 = vpop.f32.mrb[0].mxu0
    %v372 = vadd.f32 %v47, %v371
    %v373 = vpop.f32.mrb[0].mxu0
    %374 = vdwg.mxu0
    %vm375 = vcmask 122880
    %376 = vst.msk [vmem:[#allocation2] sm:$0x1] %vm375, %v372
    // Predicated region
    $region38: #{aug_info_forward.1} parent=1 // pred_check
      _
    $region39: #{aug_info_forward.1} parent=1 // pred_check_branch
      %378 = sbr.rel (0) target = $region41
    $region40: #{aug_info_forward.1} parent=1 // pred_region
      %s380 = ssub.s32 16, 16
      %381 = vsyncadd [#allocation3], %s380
      %s383 = sshll.u32 [#allocation2], 4
      %s384 = int_to_ptr.vmem [resolvable:$true] %s383
      %386 = dma.vmem_to_hbm [thread:$0]  %s384, 16, %s9, [#allocation3]
    $region41: #{aug_info_forward.1} parent=1 // pred_fallthru
      _
    // Predicated region
    $region42: #{aug_info_forward.1} parent=1 // pred_check
      _
    $region43: #{aug_info_forward.1} parent=1 // pred_check_branch
      %388 = sbr.rel (0) target = $region45
    $region44: #{aug_info_forward.1} parent=1 // pred_region
      %389 = dma.done [#allocation3], 16
    $region45: #{aug_info_forward.1} parent=1 // pred_fallthru
      _
    %390 = vsyncpa [#allocation3], 1

</llo_original>
